<compile_context>
chip_gen: v7x
topology: tpu7x:2x2x1
jax: 0.10.0
libtpu: 0.0.40
codegen_flags: <defaults>
</compile_context>

<pallas_src>
import functools

import jax
import jax.numpy as jnp
from jax import lax
from jax.experimental import pallas as pl
from jax.experimental.pallas import tpu as pltpu


# ----------------------------------------------------------------------------
# Kernels
# ----------------------------------------------------------------------------
def _linear_single_k_kernel(*refs, use_bias):
    """One MXU contraction over the whole K: o = x @ W^T (+ b). No scratch."""
    if use_bias:
        x_ref, w_ref, b_ref, o_ref = refs
    else:
        x_ref, w_ref, o_ref = refs
    acc = lax.dot_general(
        x_ref[...],
        w_ref[...],
        dimension_numbers=(((1,), (1,)), ((), ())),  # contract K of x with K of W
        preferred_element_type=jnp.float32,
    )
    if use_bias:
        acc = acc + b_ref[...].astype(jnp.float32)
    o_ref[...] = acc.astype(o_ref.dtype)


def _linear_multi_k_kernel(*refs, use_bias):
    """K-tiled reduction with an f32 VMEM accumulator (3-D grid, K innermost)."""
    if use_bias:
        x_ref, w_ref, b_ref, o_ref, acc_ref = refs
    else:
        x_ref, w_ref, o_ref, acc_ref = refs
    k = pl.program_id(2)

    @pl.when(k == 0)
    def _():
        acc_ref[...] = jnp.zeros_like(acc_ref)

    acc_ref[...] += lax.dot_general(
        x_ref[...],
        w_ref[...],
        dimension_numbers=(((1,), (1,)), ((), ())),
        preferred_element_type=jnp.float32,
    )

    @pl.when(k == pl.num_programs(2) - 1)
    def _():
        out = acc_ref[...]
        if use_bias:
            out = out + b_ref[...].astype(jnp.float32)
        o_ref[...] = out.astype(o_ref.dtype)


# ----------------------------------------------------------------------------
# Helpers
# ----------------------------------------------------------------------------
def _round_up(x, m):
    return ((x + m - 1) // m) * m


def _sublane_multiple(dtype):
    # Native sublane packing: f32 -> 8, bf16 -> 16, int8/fp8 -> 32.
    itemsize = jnp.dtype(dtype).itemsize
    return max(8, 8 * (4 // max(itemsize, 1)))


def _vmem_budget_bytes():
    """Generation-aware VMEM budget (leaves headroom for compiler scratch)."""
    cap = 64 * 1024 * 1024  # conservative fallback = v7x per-TC VMEM
    try:
        info = pltpu.get_tpu_info()
        cap = int(getattr(info, "vmem_capacity_bytes", cap)) or cap
    except Exception:
        pass
    # 64 MiB (v7x)  -> ~40 MiB budget;  128 MiB (v5e/v6e) -> ~96 MiB budget.
    return max(min(cap * 3 // 4, cap - 24 * 1024 * 1024), cap // 2, 8 * 1024 * 1024)


_VMEM_BUDGET = _vmem_budget_bytes()


def _pick_tile(total, align, cap):
    """Pick (tile, padded_total): tile is a multiple of `align`, tile <= cap,
    tile divides padded_total, preferring large tiles with (near-)minimal
    padding so ragged shapes avoid whole-operand jnp.pad round-trips."""
    padded_min = _round_up(total, align)
    if padded_min <= cap:
        return padded_min, padded_min
    cap = max(cap - cap % align, align)
    slack = max(padded_min // 8, align)  # tolerate ~12.5% padding for a big tile
    for t in range(cap, align - 1, -align):
        padded = _round_up(total, t)
        if padded - padded_min <= slack:
            return t, padded
    return align, padded_min


# ----------------------------------------------------------------------------
# Wrapper
# ----------------------------------------------------------------------------
@functools.partial(jax.jit, static_argnames=("use_bias", "vmem_budget_bytes"))
def linear_forward(x, weight, bias=None, use_bias=True, vmem_budget_bytes=None):
    """Equivalent of nn.Linear(in_features, out_features, bias).

    x:      (..., in_features)
    weight: (out_features, in_features)   -- PyTorch convention (NOT transposed)
    bias:   (out_features,) or None
    returns (..., out_features)

    Tip: pass x / weight as bfloat16 to halve HBM traffic and use the full
    bf16 MXU rate; accumulation stays in float32 either way.
    """
    N, K = weight.shape  # out_features, in_features
    leading = x.shape[:-1]
    m = 1
    for d in leading:
        m *= d
    x2d = x.reshape(m, K)

    dtype = x.dtype
    itemsize = jnp.dtype(dtype).itemsize
    out_itemsize = itemsize
    sub = _sublane_multiple(dtype)

    budget = int(vmem_budget_bytes) if vmem_budget_bytes else int(_VMEM_BUDGET)
    fit_budget = int(budget * 0.85)

    # ---- M tiling (shared by all modes) -------------------------------------
    tm, mp = _pick_tile(m, sub, 512)

    def _ws_single(tn_, n_pad_):
        # double-buffered x / W / out blocks + bias + f32 result headroom
        return (2 * (tm * K + tn_ * K) * itemsize
                + 2 * tm * tn_ * out_itemsize
                + 2 * n_pad_ * itemsize
                + tm * tn_ * 4)

    def _ws_multi(tn_, tk_):
        return (2 * (tm * tk_ + tn_ * tk_) * itemsize
                + 2 * tm * tn_ * out_itemsize
                + 2 * tn_ * itemsize
                + tm * tn_ * 4)

    # ---- Mode selection ------------------------------------------------------
    tk = kp = None
    if _ws_single(N, N) <= fit_budget:
        # Mode 1: weight fully VMEM-resident, single K step, single N block.
        mode = "single_k"
        tn, np_ = N, N
    else:
        tn, np_ = _pick_tile(N, 128, 512)
        if _ws_single(tn, np_) <= fit_budget:
            # Mode 2: single K step (tk == K, no K padding), N tiled.
            mode = "single_k"
        else:
            # Mode 3: 3-D (M, N, K) tiling with an f32 accumulator.
            mode = "multi_k"
            tk_cap = 1024 if itemsize >= 4 else 2048
            tk, kp = _pick_tile(K, 128, tk_cap)
            while _ws_multi(tn, tk) > fit_budget and tk > 128:
                tk, kp = _pick_tile(K, 128, max(128, tk // 2))
            while _ws_multi(tn, tk) > fit_budget and tn > 128:
                tn, np_ = _pick_tile(N, 128, max(128, tn // 2))
            while _ws_multi(tn, tk) > fit_budget and tm > sub:
                tm, mp = _pick_tile(m, sub, max(sub, tm // 2))

    # ---- Padding (only where unavoidable) ------------------------------------
    pad_m = mp - m
    pad_k = (kp - K) if mode == "multi_k" else 0
    if pad_m or pad_k:
        x2d = jnp.pad(x2d, ((0, pad_m), (0, pad_k)))

    w2d = weight
    b2d = bias.reshape(1, N) if use_bias else None
    if mode == "single_k":
        if np_ != N:
            w2d = jnp.pad(weight, ((0, np_ - N), (0, 0)))
            if use_bias:
                b2d = jnp.pad(b2d, ((0, 0), (0, np_ - N)))
    else:
        if (np_, kp) != (N, K):
            w2d = jnp.pad(weight, ((0, np_ - N), (0, kp - K)))
            if use_bias and np_ != N:
                b2d = jnp.pad(b2d, ((0, 0), (0, np_ - N)))

    out_shape = jax.ShapeDtypeStruct((mp, np_), dtype)

    # ---- Grid / specs ---------------------------------------------------------
    if mode == "single_k":
        grid = (mp // tm, np_ // tn)
        in_specs = [
            pl.BlockSpec((tm, K), lambda i, j: (i, 0)),
            pl.BlockSpec((tn, K), lambda i, j: (j, 0)),
        ]
        if use_bias:
            in_specs.append(pl.BlockSpec((1, tn), lambda i, j: (0, j)))
        o_spec = pl.BlockSpec((tm, tn), lambda i, j: (i, j))
        kernel = functools.partial(_linear_single_k_kernel, use_bias=use_bias)
        scratch = []
        semantics = ("parallel", "parallel")
        working = _ws_single(tn, np_)
        # x streamed once; W streamed once when fully resident, else per M block.
        w_passes = 1 if grid[1] == 1 else grid[0]
        bytes_accessed = (mp * K * itemsize
                          + w_passes * np_ * K * itemsize
                          + mp * np_ * out_itemsize)
    else:
        grid = (mp // tm, np_ // tn, kp // tk)
        in_specs = [
            pl.BlockSpec((tm, tk), lambda i, j, k: (i, k)),
            pl.BlockSpec((tn, tk), lambda i, j, k: (j, k)),
        ]
        if use_bias:
            in_specs.append(pl.BlockSpec((1, tn), lambda i, j, k: (0, j)))
        o_spec = pl.BlockSpec((tm, tn), lambda i, j, k: (i, j))
        kernel = functools.partial(_linear_multi_k_kernel, use_bias=use_bias)
        scratch = [pltpu.VMEM((tm, tn), jnp.float32)]
        semantics = ("parallel", "parallel", "arbitrary")
        working = _ws_multi(tn, tk)
        # x re-streamed once per N block, W once per M block, output written once.
        bytes_accessed = (grid[1] * mp * kp * itemsize
                          + grid[0] * np_ * kp * itemsize
                          + mp * np_ * out_itemsize)

    cost = pl.CostEstimate(
        flops=2 * m * N * K,
        transcendentals=0,
        bytes_accessed=int(bytes_accessed),
    )
    vmem_limit = int(max(min(budget, working + (8 << 20)), 24 << 20))
    cparams = pltpu.CompilerParams(
        dimension_semantics=semantics,
        vmem_limit_bytes=vmem_limit,
    )

    operands = (x2d, w2d, b2d) if use_bias else (x2d, w2d)
    y2d = pl.pallas_call(
        kernel,
        out_shape=out_shape,
        grid_spec=pltpu.PrefetchScalarGridSpec(
            num_scalar_prefetch=0,
            grid=grid,
            in_specs=in_specs,
            out_specs=o_spec,
            scratch_shapes=scratch,
        ),
        compiler_params=cparams,
        cost_estimate=cost,
    )(*operands)

    if mp != m or np_ != N:
        y2d = y2d[:m, :N]
    return y2d.reshape(*leading, N)


# ----------------------------------------------------------------------------
# Demo / self-test
# ----------------------------------------------------------------------------
if __name__ == "__main__":
    key = jax.random.PRNGKey(0)

    # --- Test 1: small shapes matching the module's typical use --------------
    in_features, out_features = 32, 64
    batch, seq = 2, 8

    kx, kw, kb = jax.random.split(key, 3)
    bound = 1.0 / (in_features ** 0.5)
    weight = jax.random.uniform(
        kw, (out_features, in_features), jnp.float32, minval=-bound, maxval=bound
    )
    bias = jax.random.uniform(
        kb, (out_features,), jnp.float32, minval=-bound, maxval=bound
    )
    x = jax.random.normal(kx, (batch, seq, in_features), jnp.float32)

    y = linear_forward(x, weight, bias, use_bias=True)
    jax.block_until_ready(y)
    y_ref = x @ weight.T + bias
    assert y.shape == (batch, seq, out_features)
    assert jnp.allclose(y, y_ref, atol=1e-5, rtol=1e-5)

    # no-bias path
    y_nb = linear_forward(x, weight, use_bias=False)
    jax.block_until_ready(y_nb)
    assert jnp.allclose(y_nb, x @ weight.T, atol=1e-5, rtol=1e-5)

    # --- Test 2: ragged shapes (weight-resident single-K path, no W padding) --
    in2, out2 = 640, 300
    k2x, k2w, k2b = jax.random.split(jax.random.PRNGKey(1), 3)
    bound2 = 1.0 / (in2 ** 0.5)
    w2 = jax.random.uniform(k2w, (out2, in2), jnp.float32, minval=-bound2, maxval=bound2)
    b2 = jax.random.uniform(k2b, (out2,), jnp.float32, minval=-bound2, maxval=bound2)
    x2 = jax.random.normal(k2x, (3, 100, in2), jnp.float32)

    y2 = linear_forward(x2, w2, b2, use_bias=True)
    jax.block_until_ready(y2)
    y2_ref = (
        jnp.einsum("bsi,oi->bso", x2, w2, precision=jax.lax.Precision.HIGHEST) + b2
    )
    assert y2.shape == (3, 100, out2)
    assert jnp.allclose(y2, y2_ref, atol=2e-2, rtol=2e-2)

    # --- Test 3: force the K-tiled accumulator path via a tiny VMEM budget ----
    in3, out3 = 512, 384
    k3x, k3w, k3b = jax.random.split(jax.random.PRNGKey(2), 3)
    bound3 = 1.0 / (in3 ** 0.5)
    w3 = jax.random.uniform(k3w, (out3, in3), jnp.float32, minval=-bound3, maxval=bound3)
    b3 = jax.random.uniform(k3b, (out3,), jnp.float32, minval=-bound3, maxval=bound3)
    x3 = jax.random.normal(k3x, (2, 100, in3), jnp.float32)

    y3 = linear_forward(x3, w3, b3, use_bias=True,
                        vmem_budget_bytes=2 * 1024 * 1024)
    jax.block_until_ready(y3)
    y3_ref = (
        jnp.einsum("bsi,oi->bso", x3, w3, precision=jax.lax.Precision.HIGHEST) + b3
    )
    assert y3.shape == (2, 100, out3)
    assert jnp.allclose(y3, y3_ref, atol=2e-2, rtol=2e-2)

    print("KERNEL_OK")
</pallas_src>

<mosaic_0001>
module attributes {stable_mosaic.version = 11 : i64} {
  func.func @_linear_single_k_kernel(%arg0: i32, %arg1: i32, %arg2: memref<16x32xf32, #tpu.memory_space<vmem>>, %arg3: memref<64x32xf32, #tpu.memory_space<vmem>>, %arg4: memref<1x64xf32, #tpu.memory_space<vmem>>, %arg5: memref<16x64xf32, #tpu.memory_space<vmem>>) attributes {dimension_semantics = [#tpu.dimension_semantics<parallel>, #tpu.dimension_semantics<parallel>], iteration_bounds = array<i64: 1, 1>, scalar_prefetch = 0 : i64, scratch_operands = 0 : i64, tpu.core_type = #tpu.core_type<tc>, window_params = [{transform_indices = @transform_0, window_bounds = array<i64: 16, 32>}, {transform_indices = @transform_1, window_bounds = array<i64: 64, 32>}, {transform_indices = @transform_2, window_bounds = array<i64: 1, 64>}, {transform_indices = @transform_3, window_bounds = array<i64: 16, 64>}]} {
    %c0 = arith.constant 0 : index
    %c0_0 = arith.constant 0 : index
    %0 = vector.load %arg2[%c0, %c0_0] : memref<16x32xf32, #tpu.memory_space<vmem>>, vector<16x32xf32>
    %c0_1 = arith.constant 0 : index
    %c0_2 = arith.constant 0 : index
    %1 = vector.load %arg3[%c0_1, %c0_2] : memref<64x32xf32, #tpu.memory_space<vmem>>, vector<64x32xf32>
    %cst = arith.constant dense<0.000000e+00> : vector<16x64xf32>
    %2 = tpu.matmul %0, %1, %cst {dimension_numbers = #tpu.dot_dimension_numbers<[1], [1], [0], [0], [0, 0, 1, 0], [], []>} : vector<16x32xf32>, vector<64x32xf32>, vector<16x64xf32> -> vector<16x64xf32>
    %c0_3 = arith.constant 0 : index
    %c0_4 = arith.constant 0 : index
    %3 = vector.load %arg4[%c0_3, %c0_4] : memref<1x64xf32, #tpu.memory_space<vmem>>, vector<1x64xf32>
    %4 = vector.broadcast %3 : vector<1x64xf32> to vector<16x64xf32>
    %5 = arith.addf %2, %4 : vector<16x64xf32>
    %c0_5 = arith.constant 0 : index
    %c0_6 = arith.constant 0 : index
    %6 = vector.load %arg5[%c0_5, %c0_6] : memref<16x64xf32, #tpu.memory_space<vmem>>, vector<16x64xf32>
    tpu.vector_store %arg5[%c0_5, %c0_6], %5 {strides = array<i32>} : memref<16x64xf32, #tpu.memory_space<vmem>>, vector<16x64xf32>,
    return
  }
  func.func @transform_0(%arg0: i32, %arg1: i32) -> (i32, i32) {
    %c0_i32 = arith.constant 0 : i32
    %c0_i32_0 = arith.constant 0 : i32
    return %arg0, %c0_i32 : i32, i32
  }
  func.func @transform_1(%arg0: i32, %arg1: i32) -> (i32, i32) {
    %c0_i32 = arith.constant 0 : i32
    %c0_i32_0 = arith.constant 0 : i32
    return %arg1, %c0_i32 : i32, i32
  }
  func.func @transform_2(%arg0: i32, %arg1: i32) -> (i32, i32) {
    %c0_i32 = arith.constant 0 : i32
    %c0_i32_0 = arith.constant 0 : i32
    return %c0_i32, %arg1 : i32, i32
  }
  func.func @transform_3(%arg0: i32, %arg1: i32) -> (i32, i32) {
    %c0_i32 = arith.constant 0 : i32
    return %arg0, %arg1 : i32, i32
  }
}

</mosaic_0001>

<llo_original>
// kernel: linear_forward.1
$region0: #{linear_forward.1}
  #allocation0 [shape = 'u32[]', space=smem, size = 0x4, offset = 0x4, fixed_abs, tag = 'smem constant byte address 0x4 - core index']
  #allocation1 [shape = 'u32[144,128]{1,0:T(1,128)}', space=vmem, size = 0x12000, scoped, tag = 'internal scratch']
  %s0 = inlined_call_operand.vmem [shape: f32[16,32], index: 0, kind: input, shape index: {}]
  %s1 = inlined_call_operand.vmem [shape: f32[64,32], index: 1, kind: input, shape index: {}]
  %s2 = inlined_call_operand.vmem [shape: f32[1,64], index: 2, kind: input, shape index: {}]
  %s3 = inlined_call_operand.hbm [shape: f32[16,64], index: 3, kind: output, shape index: {}]
  %s4 = sld [smem:[#allocation0]]
  $region22: #{linear_forward.1} parent=0
    _
  %s6 = ssub.s32 1, %s4
  %s7 = scalar_select 0, %s6, %s4
  $region1: #{linear_forward.1} parent=0
    #allocation2 [shape = 'u8[8192]{0}', space=vmem, size = 0x2000, scoped, tag = 'output window, operand 0, single buffered']
    #allocation3 [shape = 's32[1]{0}', space=sflag, size = 0x4, scoped, tag = 'scoped memory for linear_forward.1']
    %8 = vsyncpa [#allocation3], 0
    // Predicated region
    $region2: #{linear_forward.1} parent=1 // pred_check
      _
    $region3: #{linear_forward.1} parent=1 // pred_check_branch
      %10 = sbr.rel (0) target = $region5
    $region4: #{linear_forward.1} parent=1 // pred_region
      _
    $region5: #{linear_forward.1} parent=1 // pred_fallthru
      _
    // Predicated region
    $region6: #{linear_forward.1} parent=1 // pred_check
      _
    $region7: #{linear_forward.1} parent=1 // pred_check_branch
      %12 = sbr.rel (0) target = $region9
    $region8: #{linear_forward.1} parent=1 // pred_region
      _
    $region9: #{linear_forward.1} parent=1 // pred_fallthru
      _
    // Predicated region
    $region10: #{linear_forward.1} parent=1 // pred_check
      _
    $region11: #{linear_forward.1} parent=1 // pred_check_branch
      %14 = sbr.rel (0) target = $region13
    $region12: #{linear_forward.1} parent=1 // pred_region
      _
    $region13: #{linear_forward.1} parent=1 // pred_fallthru
      _
    %v15 = vld [vmem:[%s0] sm:$0xff]
    %v16 = vld [vmem:[%s0 + $0x8] sm:$0xff]
    %v17 = vld [vmem:[%s1] sm:$0xff]
    %v18 = vld [vmem:[%s1 + $0x8] sm:$0xff]
    %v19 = vld [vmem:[%s1 + $0x10] sm:$0xff]
    %v20 = vld [vmem:[%s1 + $0x18] sm:$0xff]
    %v21 = vld [vmem:[%s1 + $0x20] sm:$0xff]
    %v22 = vld [vmem:[%s1 + $0x28] sm:$0xff]
    %v23 = vld [vmem:[%s1 + $0x30] sm:$0xff]
    %v24 = vld [vmem:[%s1 + $0x38] sm:$0xff]
    %v25 = vld [vmem:[%s2] sm:$0x1]
    %v27 = vlaneseq
    %v28 = vshrl.u32 %v27, 7
    %v29 = vsub.s32 0, %v28
    %v30 = vrot.slane %v25, %v29
    %vm32 = vcmask 261120
    %v34 = vsel %vm32, %v15, 0
    %v37 = vsel %vm32, %v16, 0
    %v40 = vsel %vm32, %v17, 0
    %v43 = vsel %vm32, %v18, 0
    %v46 = vsel %vm32, %v19, 0
    %v49 = vsel %vm32, %v20, 0
    %v52 = vsel %vm32, %v21, 0
    %v55 = vsel %vm32, %v22, 0
    %v58 = vsel %vm32, %v23, 0
    %v61 = vsel %vm32, %v24, 0
    %63 = vmatprep.subr.mxu0 0.0
    %64 = vmatpush1.xpose.msra.mxu0 %v40
    %65 = vmatprep.subr.mxu0 0.0
    %66 = vmatpush1.xpose.msra.mxu0 %v43
    %67 = vmatprep.subr.mxu0 0.0
    %68 = vmatpush1.xpose.msra.mxu0 %v46
    %69 = vmatprep.subr.mxu0 0.0
    %70 = vmatpush1.xpose.msra.mxu0 %v49
    %71 = vmatprep.subr.mxu0 0.0
    %72 = vmatpush1.xpose.msra.mxu0 %v52
    %73 = vmatprep.subr.mxu0 0.0
    %74 = vmatpush1.xpose.msra.mxu0 %v55
    %75 = vmatprep.subr.mxu0 0.0
    %76 = vmatpush1.xpose.msra.mxu0 %v58
    %77 = vmatprep.subr.mxu0 0.0
    %78 = vmatpush1.xpose.msra.mxu0 %v61
    %79 = vmatprep.subr.mxu0 0.0
    %80 = vmatpush1.xpose.msra.mxu0 0.0
    %81 = vmatprep.subr.mxu0 0.0
    %82 = vmatpush1.xpose.msra.mxu0 0.0
    %83 = vmatprep.subr.mxu0 0.0
    %84 = vmatpush1.xpose.msra.mxu0 0.0
    %85 = vmatprep.subr.mxu0 0.0
    %86 = vmatpush1.xpose.msra.mxu0 0.0
    %87 = vmatprep.subr.mxu0 0.0
    %88 = vmatpush1.xpose.msra.mxu0 0.0
    %89 = vmatprep.subr.mxu0 0.0
    %90 = vmatpush1.xpose.msra.mxu0 0.0
    %91 = vmatprep.subr.mxu0 0.0
    %92 = vmatpush1.xpose.msra.mxu0 0.0
    %93 = vmatprep.subr.mxu0 0.0
    %94 = vmatpush1.xpose.msra.mxu0 0.0
    %95 = vmatprep.subr.mxu0 0.0
    %96 = vmatpush1.xpose.msra.mxu0 0.0
    %97 = vmatprep.subr.mxu0 0.0
    %98 = vmatpush1.xpose.msra.mxu0 0.0
    %99 = vmatprep.subr.mxu0 0.0
    %100 = vmatpush1.xpose.msra.mxu0 0.0
    %101 = vmatprep.subr.mxu0 0.0
    %102 = vmatpush1.xpose.msra.mxu0 0.0
    %103 = vmatprep.subr.mxu0 0.0
    %104 = vmatpush1.xpose.msra.mxu0 0.0
    %105 = vmatprep.subr.mxu0 0.0
    %106 = vmatpush1.xpose.msra.mxu0 0.0
    %107 = vmatprep.subr.mxu0 0.0
    %108 = vmatpush1.xpose.msra.mxu0 0.0
    %109 = vmatprep.subr.mxu0 0.0
    %110 = vmatpush1.xpose.msra.mxu0 0.0
    %111 = vmatprep.subr.mxu0 0.0
    %112 = vmatpush1.xpose.msra.mxu0 0.0
    %113 = vmatprep.subr.mxu0 0.0
    %114 = vmatpush1.xpose.msra.mxu0 0.0
    %115 = vmatprep.subr.mxu0 0.0
    %116 = vmatpush1.xpose.msra.mxu0 0.0
    %117 = vmatprep.subr.mxu0 0.0
    %118 = vmatpush1.xpose.msra.mxu0 0.0
    %119 = vmatprep.subr.mxu0 0.0
    %120 = vmatpush1.xpose.msra.mxu0 0.0
    %121 = vmatprep.subr.mxu0 0.0
    %122 = vmatpush1.xpose.msra.mxu0 0.0
    %123 = vmatprep.subr.mxu0 0.0
    %124 = vmatpush1.xpose.msra.mxu0 0.0
    %125 = vmatprep.subr.mxu0 0.0
    %126 = vmatpush1.xpose.msra.mxu0 0.0
    %127 = vmatprep.mubr.f32.mxu0 0.0
    %128 = vmatmul.mubr.f32.gmra.mrb[0].mxu0 %v34
    %v129 = vpop.f32.mrb[0].mxu0
    %v130 = vadd.f32 %v30, %v129
    %v131 = vpop.f32.mrb[0].mxu0
    %132 = vmatprep.mubr.f32.mxu0 0.0
    %133 = vmatmul.mubr.f32.gmra.mrb[0].mxu0 %v37
    %v134 = vpop.f32.mrb[0].mxu0
    %v135 = vadd.f32 %v30, %v134
    %v136 = vpop.f32.mrb[0].mxu0
    %137 = vdwg.mxu0
    %vm138 = vcmask 523264
    %139 = vst.msk [vmem:[#allocation2] sm:$0xff] %vm138, %v130
    %140 = vst.msk [vmem:[#allocation2 + $0x8] sm:$0xff] %vm138, %v135
    // Predicated region
    $region14: #{linear_forward.1} parent=1 // pred_check
      _
    $region15: #{linear_forward.1} parent=1 // pred_check_branch
      %142 = sbr.rel (0) target = $region17
    $region16: #{linear_forward.1} parent=1 // pred_region
      %s144 = ssub.s32 256, 256
      %145 = vsyncadd [#allocation3], %s144
      %s146 = sshll.u32 [#allocation2], 4
      %s147 = int_to_ptr.vmem [resolvable:$true] %s146
      %152 = dma.vmem_to_hbm [thread:$0]  %s147, 256, %s3, [#allocation3], 128, 128, 8
    $region17: #{linear_forward.1} parent=1 // pred_fallthru
      _
    // Predicated region
    $region18: #{linear_forward.1} parent=1 // pred_check
      _
    $region19: #{linear_forward.1} parent=1 // pred_check_branch
      %154 = sbr.rel (0) target = $region21
    $region20: #{linear_forward.1} parent=1 // pred_region
      %155 = dma.done [#allocation3], 256
    $region21: #{linear_forward.1} parent=1 // pred_fallthru
      _
    %156 = vsyncpa [#allocation3], 1

</llo_original>
